<compile_context>
chip_gen: v7x
topology: tpu7x:2x2x1
jax: 0.10.0
libtpu: 0.0.40
codegen_flags: <defaults>
</compile_context>

<pallas_src>
import jax
import jax.numpy as jnp
from jax.experimental import pallas as pl
from jax.experimental.pallas import tpu as pltpu

EPS = 1e-5  # BatchNorm2d default eps


def _ssn_kernel(x_ref, gamma_ref, beta_ref, out_ref):
    # x_ref: (N, block_cg, Fg*T) tile. Per sub-band channel (axis 1), normalize
    # over batch (axis 0) and spatial (axis 2).
    x = x_ref[...].astype(jnp.float32)
    m = x.shape[0] * x.shape[2]  # static reduction count

    # Two-stage reduction: lanes (axis 2, XLU) then leading axis 0 (cheap vreg adds).
    row_sum = jnp.sum(x, axis=2, keepdims=True)          # (N, block_cg, 1)
    mean = jnp.sum(row_sum, axis=0, keepdims=True) / m   # (1, block_cg, 1)

    xc = x - mean
    row_sq = jnp.sum(xc * xc, axis=2, keepdims=True)     # (N, block_cg, 1)
    var = jnp.sum(row_sq, axis=0, keepdims=True) / m     # biased var (training BN)

    inv = jax.lax.rsqrt(var + EPS)
    scale = inv * gamma_ref[...].astype(jnp.float32)     # (1, block_cg, 1)
    shift = beta_ref[...].astype(jnp.float32) - mean * scale

    out_ref[...] = (x * scale + shift).astype(out_ref.dtype)


def _pick_block_cg(cg, row_bytes, pack, tile_budget_bytes):
    """Largest multiple-of-`pack` divisor of cg whose 4x-buffered tile fits the
    VMEM budget, preferring choices that leave a grid of >= 2 (megacore)."""
    cands = sorted({b for b in range(pack, cg + 1, pack) if cg % b == 0},
                   reverse=True)
    if not cands:
        return cg  # cg smaller than / not a multiple of pack: single full block
    fits = [b for b in cands if 4 * b * row_bytes <= tile_budget_bytes]
    if not fits:
        return cands[-1]
    multi_core = [b for b in fits if cg // b >= 2]
    return multi_core[0] if multi_core else fits[0]


def sub_spectral_norm(x, gamma, beta, spec_groups=16, vmem_limit_bytes=48 << 20):
    """x: (N, C, F, T) NCHW (PyTorch conv convention). gamma/beta: (C*spec_groups, 1)."""
    n, c, f, t = x.shape
    assert f % spec_groups == 0
    fg = f // spec_groups
    cg = c * spec_groups
    fgt = fg * t

    # Free reshapes only (no HBM transpose): (N, C, F, T) -> (N, CG, Fg*T).
    xr = x.reshape(n, cg, fgt)
    g = gamma.reshape(1, cg, 1)
    b = beta.reshape(1, cg, 1)

    itemsize = jnp.dtype(x.dtype).itemsize
    pack = 8 if itemsize >= 4 else 16  # bf16/int8 pack more rows per vreg
    row_bytes = n * fgt * itemsize     # bytes per sub-band-channel row of a tile
    tile_budget = max(vmem_limit_bytes // 2, vmem_limit_bytes - (16 << 20))
    block_cg = _pick_block_cg(cg, row_bytes, pack, tile_budget)

    out = pl.pallas_call(
        _ssn_kernel,
        out_shape=jax.ShapeDtypeStruct((n, cg, fgt), x.dtype),
        grid_spec=pltpu.PrefetchScalarGridSpec(
            num_scalar_prefetch=0,
            grid=(cg // block_cg,),
            in_specs=[
                pl.BlockSpec((n, block_cg, fgt), lambda i: (0, i, 0)),
                pl.BlockSpec((1, block_cg, 1), lambda i: (0, i, 0)),
                pl.BlockSpec((1, block_cg, 1), lambda i: (0, i, 0)),
            ],
            out_specs=pl.BlockSpec((n, block_cg, fgt), lambda i: (0, i, 0)),
        ),
        compiler_params=pltpu.CompilerParams(
            dimension_semantics=("parallel",),
            vmem_limit_bytes=vmem_limit_bytes,
        ),
    )(xr, g, b)

    return out.reshape(n, c, f, t)


def _reference(x, gamma, beta, spec_groups=16):
    n, c, f, t = x.shape
    fg = f // spec_groups
    cg = c * spec_groups
    xr = x.reshape(n, cg, fg, t).astype(jnp.float32)
    mean = jnp.mean(xr, axis=(0, 2, 3), keepdims=True)
    var = jnp.mean((xr - mean) ** 2, axis=(0, 2, 3), keepdims=True)
    g = gamma.reshape(1, cg, 1, 1)
    b = beta.reshape(1, cg, 1, 1)
    y = (xr - mean) * jax.lax.rsqrt(var + EPS) * g + b
    return y.reshape(n, c, f, t).astype(x.dtype)


if __name__ == "__main__":
    # Shapes consistent with the module: (N, C, F, T), F divisible by spec_groups.
    N, C, F, T = 2, 4, 32, 16
    SPEC_GROUPS = 16
    CG = C * SPEC_GROUPS

    key = jax.random.PRNGKey(0)
    x = jax.random.normal(key, (N, C, F, T), dtype=jnp.float32)

    # Deterministic per-sub-band affine params (affine='Sub' -> BN has gamma/beta).
    gamma = (1.0 + 0.05 * jnp.arange(CG, dtype=jnp.float32)).reshape(CG, 1)
    beta = (0.01 * jnp.arange(CG, dtype=jnp.float32)).reshape(CG, 1)

    y = sub_spectral_norm(x, gamma, beta, spec_groups=SPEC_GROUPS)
    y = jax.block_until_ready(y)

    y_ref = _reference(x, gamma, beta, spec_groups=SPEC_GROUPS)
    assert y.shape == (N, C, F, T)
    assert jnp.max(jnp.abs(y - y_ref)) < 1e-4

    print("KERNEL_OK")
</pallas_src>

<mosaic_0001>
module attributes {stable_mosaic.version = 11 : i64} {
  func.func @_ssn_kernel(%arg0: i32, %arg1: memref<2x32x32xf32, #tpu.memory_space<vmem>>, %arg2: memref<1x32x1xf32, #tpu.memory_space<vmem>>, %arg3: memref<1x32x1xf32, #tpu.memory_space<vmem>>, %arg4: memref<2x32x32xf32, #tpu.memory_space<vmem>>) attributes {dimension_semantics = [#tpu.dimension_semantics<parallel>], iteration_bounds = array<i64: 2>, scalar_prefetch = 0 : i64, scratch_operands = 0 : i64, tpu.core_type = #tpu.core_type<tc>, window_params = [{transform_indices = @transform_0, window_bounds = array<i64: 2, 32, 32>}, {transform_indices = @transform_1, window_bounds = array<i64: 1, 32, 1>}, {transform_indices = @transform_2, window_bounds = array<i64: 1, 32, 1>}, {transform_indices = @transform_3, window_bounds = array<i64: 2, 32, 32>}]} {
    %c0 = arith.constant 0 : index
    %c0_0 = arith.constant 0 : index
    %c0_1 = arith.constant 0 : index
    %0 = vector.load %arg1[%c0, %c0_0, %c0_1] : memref<2x32x32xf32, #tpu.memory_space<vmem>>, vector<2x32x32xf32>
    %cst = arith.constant dense<0.000000e+00> : vector<2x32xf32>
    %1 = vector.multi_reduction <add>, %0, %cst [2] : vector<2x32x32xf32> to vector<2x32xf32>
    %2 = vector.shape_cast %1 : vector<2x32xf32> to vector<2x32x1xf32>
    %cst_2 = arith.constant dense<0.000000e+00> : vector<32x1xf32>
    %3 = vector.multi_reduction <add>, %2, %cst_2 [0] : vector<2x32x1xf32> to vector<32x1xf32>
    %4 = vector.shape_cast %3 : vector<32x1xf32> to vector<1x32x1xf32>
    %cst_3 = arith.constant 6.400000e+01 : f32
    %5 = vector.broadcast %cst_3 : f32 to vector<1x32x1xf32>
    %6 = arith.divf %4, %5 : vector<1x32x1xf32>
    %7 = vector.broadcast %6 : vector<1x32x1xf32> to vector<2x32x32xf32>
    %8 = arith.subf %0, %7 : vector<2x32x32xf32>
    %9 = arith.mulf %8, %8 : vector<2x32x32xf32>
    %cst_4 = arith.constant dense<0.000000e+00> : vector<2x32xf32>
    %10 = vector.multi_reduction <add>, %9, %cst_4 [2] : vector<2x32x32xf32> to vector<2x32xf32>
    %11 = vector.shape_cast %10 : vector<2x32xf32> to vector<2x32x1xf32>
    %cst_5 = arith.constant dense<0.000000e+00> : vector<32x1xf32>
    %12 = vector.multi_reduction <add>, %11, %cst_5 [0] : vector<2x32x1xf32> to vector<32x1xf32>
    %13 = vector.shape_cast %12 : vector<32x1xf32> to vector<1x32x1xf32>
    %cst_6 = arith.constant 6.400000e+01 : f32
    %14 = vector.broadcast %cst_6 : f32 to vector<1x32x1xf32>
    %15 = arith.divf %13, %14 : vector<1x32x1xf32>
    %cst_7 = arith.constant 9.99999974E-6 : f32
    %16 = vector.broadcast %cst_7 : f32 to vector<1x32x1xf32>
    %17 = arith.addf %15, %16 : vector<1x32x1xf32>
    %18 = math.rsqrt %17 : vector<1x32x1xf32>
    %c0_8 = arith.constant 0 : index
    %c0_9 = arith.constant 0 : index
    %c0_10 = arith.constant 0 : index
    %19 = vector.load %arg2[%c0_8, %c0_9, %c0_10] : memref<1x32x1xf32, #tpu.memory_space<vmem>>, vector<1x32x1xf32>
    %20 = arith.mulf %18, %19 : vector<1x32x1xf32>
    %c0_11 = arith.constant 0 : index
    %c0_12 = arith.constant 0 : index
    %c0_13 = arith.constant 0 : index
    %21 = vector.load %arg3[%c0_11, %c0_12, %c0_13] : memref<1x32x1xf32, #tpu.memory_space<vmem>>, vector<1x32x1xf32>
    %22 = arith.mulf %6, %20 : vector<1x32x1xf32>
    %23 = arith.subf %21, %22 : vector<1x32x1xf32>
    %24 = vector.broadcast %20 : vector<1x32x1xf32> to vector<2x32x32xf32>
    %25 = arith.mulf %0, %24 : vector<2x32x32xf32>
    %26 = vector.broadcast %23 : vector<1x32x1xf32> to vector<2x32x32xf32>
    %27 = arith.addf %25, %26 : vector<2x32x32xf32>
    %c0_14 = arith.constant 0 : index
    %c0_15 = arith.constant 0 : index
    %c0_16 = arith.constant 0 : index
    %28 = vector.load %arg4[%c0_14, %c0_15, %c0_16] : memref<2x32x32xf32, #tpu.memory_space<vmem>>, vector<2x32x32xf32>
    tpu.vector_store %arg4[%c0_14, %c0_15, %c0_16], %27 {strides = array<i32>} : memref<2x32x32xf32, #tpu.memory_space<vmem>>, vector<2x32x32xf32>,
    return
  }
  func.func @transform_0(%arg0: i32) -> (i32, i32, i32) {
    %c0_i32 = arith.constant 0 : i32
    %c0_i32_0 = arith.constant 0 : i32
    %c0_i32_1 = arith.constant 0 : i32
    return %c0_i32, %arg0, %c0_i32_0 : i32, i32, i32
  }
  func.func @transform_1(%arg0: i32) -> (i32, i32, i32) {
    %c0_i32 = arith.constant 0 : i32
    %c0_i32_0 = arith.constant 0 : i32
    %c0_i32_1 = arith.constant 0 : i32
    return %c0_i32, %arg0, %c0_i32_0 : i32, i32, i32
  }
  func.func @transform_2(%arg0: i32) -> (i32, i32, i32) {
    %c0_i32 = arith.constant 0 : i32
    %c0_i32_0 = arith.constant 0 : i32
    %c0_i32_1 = arith.constant 0 : i32
    return %c0_i32, %arg0, %c0_i32_0 : i32, i32, i32
  }
  func.func @transform_3(%arg0: i32) -> (i32, i32, i32) {
    %c0_i32 = arith.constant 0 : i32
    %c0_i32_0 = arith.constant 0 : i32
    %c0_i32_1 = arith.constant 0 : i32
    return %c0_i32, %arg0, %c0_i32_0 : i32, i32, i32
  }
}

</mosaic_0001>

<llo_original>
// kernel: tpu_custom_call.1
$region0: #{tpu_custom_call.1}
  #allocation0 [shape = 'u32[]', space=smem, size = 0x4, offset = 0x4, fixed_abs, tag = 'smem constant byte address 0x4 - core index']
  #allocation1 [shape = 'u32[144,128]{1,0:T(1,128)}', space=vmem, size = 0x12000, scoped, tag = 'internal scratch']
  %s0 = inlined_call_operand.vmem [shape: f32[2,64,32], index: 0, kind: input, shape index: {}]
  %s1 = inlined_call_operand.vmem [shape: f32[1,64,1], index: 1, kind: input, shape index: {}]
  %s2 = inlined_call_operand.vmem [shape: f32[1,64,1], index: 2, kind: input, shape index: {}]
  %s3 = inlined_call_operand.vmem [shape: f32[2,64,32], index: 3, kind: output, shape index: {}]
  %s4 = sld [smem:[#allocation0]]
  $region117: #{tpu_custom_call.1} parent=0
    _
  %s6 = ssub.s32 1, %s4
  %s7 = scalar_select 0, %s6, %s4
  $region1: #{tpu_custom_call.1} parent=0
    #allocation2 [shape = 'u8[65536]{0}', space=vmem, size = 0x10000, scoped, tag = 'input window, operand 0']
    #allocation3 [shape = 'u8[65536]{0}', space=vmem, size = 0x10000, scoped, tag = 'output window, operand 0']
    loop: start=0, step=1, limit=4
    $region2: #{tpu_custom_call.1} parent=1 // loop_pre_header
      _
    $region3: #{tpu_custom_call.1} parent=1 // loop_header
      %s9 = sphi 0, %s13
      %p10 = scmp.ge.s32.totalorder %s9, 4
      %s19 = sphi 0, %s21
      %s22 = sphi 0, %s19
      %s23 = sphi 0, %s22
      %s39 = sphi 0, %s23
      %s45 = sphi 0, %s47
      %s48 = sphi 0, %s45
      %s49 = sphi 0, %s48
      %s65 = sphi 0, %s49
      %s71 = sphi 0, %s73
      %s74 = sphi 0, %s71
      %s75 = sphi 0, %s74
      %s91 = sphi 0, %s75
      %s97 = sphi 0, %s99
      %s100 = sphi 0, %s97
      %s101 = sphi 0, %s100
      %s117 = sphi 0, %s101
    $region4: #{tpu_custom_call.1} parent=1 // loop_header_branch
      %12 = sbr.rel (%p10) target = $region8
    $region5: #{tpu_custom_call.1} parent=1 // loop_body
      %s14 = ssub.s32 %s9, 1
      %s15 = ssub.s32 %s9, 2
      %s16 = sadd.s32 %s9, 1
      %s17 = ssub.s32 %s9, %s16
      %p18 = scmp.eq.s32.totalorder %s17, 0
      %s20 = sadd.s32 %s19, 1
      %s21 = scalar_select %p18, %s19, %s20
      %p24 = pneg %p18
      %p25 = scmp.eq.s32.totalorder %s9, 1
      %p26 = por %p24, %p25
      %p27 = scmp.ne.s32.totalorder %s19, %s22
      %p28 = scmp.eq.s32.totalorder %s9, 0
      %p29 = por %p27, %p28
      %p30 = scmp.ne.s32.totalorder %s19, %s22
      %p31 = scmp.eq.s32.totalorder %s14, 1
      %p32 = por %p30, %p31
      %p33 = scmp.ne.s32.totalorder %s22, %s23
      %p34 = scmp.eq.s32.totalorder %s14, 0
      %p35 = por %p33, %p34
      %p36 = scmp.ne.s32.totalorder %s22, %s23
      %p37 = scmp.eq.s32.totalorder %s15, 1
      %p38 = por %p36, %p37
      %p40 = scmp.ne.s32.totalorder %s23, %s39
      %p41 = scmp.eq.s32.totalorder %s15, 0
      %p42 = por %p40, %p41
      %s43 = ssub.s32 %s9, %s16
      %p44 = scmp.eq.s32.totalorder %s43, 0
      %s46 = sadd.s32 %s45, 1
      %s47 = scalar_select %p44, %s45, %s46
      %p50 = pneg %p44
      %p51 = scmp.eq.s32.totalorder %s9, 1
      %p52 = por %p50, %p51
      %p53 = scmp.ne.s32.totalorder %s45, %s48
      %p54 = scmp.eq.s32.totalorder %s9, 0
      %p55 = por %p53, %p54
      %p56 = scmp.ne.s32.totalorder %s45, %s48
      %p57 = scmp.eq.s32.totalorder %s14, 1
      %p58 = por %p56, %p57
      %p59 = scmp.ne.s32.totalorder %s48, %s49
      %p60 = scmp.eq.s32.totalorder %s14, 0
      %p61 = por %p59, %p60
      %p62 = scmp.ne.s32.totalorder %s48, %s49
      %p63 = scmp.eq.s32.totalorder %s15, 1
      %p64 = por %p62, %p63
      %p66 = scmp.ne.s32.totalorder %s49, %s65
      %p67 = scmp.eq.s32.totalorder %s15, 0
      %p68 = por %p66, %p67
      %s69 = ssub.s32 %s9, %s16
      %p70 = scmp.eq.s32.totalorder %s69, 0
      %s72 = sadd.s32 %s71, 1
      %s73 = scalar_select %p70, %s71, %s72
      %p76 = pneg %p70
      %p77 = scmp.eq.s32.totalorder %s9, 1
      %p78 = por %p76, %p77
      %p79 = scmp.ne.s32.totalorder %s71, %s74
      %p80 = scmp.eq.s32.totalorder %s9, 0
      %p81 = por %p79, %p80
      %p82 = scmp.ne.s32.totalorder %s71, %s74
      %p83 = scmp.eq.s32.totalorder %s14, 1
      %p84 = por %p82, %p83
      %p85 = scmp.ne.s32.totalorder %s74, %s75
      %p86 = scmp.eq.s32.totalorder %s14, 0
      %p87 = por %p85, %p86
      %p88 = scmp.ne.s32.totalorder %s74, %s75
      %p89 = scmp.eq.s32.totalorder %s15, 1
      %p90 = por %p88, %p89
      %p92 = scmp.ne.s32.totalorder %s75, %s91
      %p93 = scmp.eq.s32.totalorder %s15, 0
      %p94 = por %p92, %p93
      %s95 = ssub.s32 %s9, %s16
      %p96 = scmp.eq.s32.totalorder %s95, 0
      %s98 = sadd.s32 %s97, 1
      %s99 = scalar_select %p96, %s97, %s98
      %p102 = pneg %p96
      %p103 = scmp.eq.s32.totalorder %s9, 1
      %p104 = por %p102, %p103
      %p105 = scmp.ne.s32.totalorder %s97, %s100
      %p106 = scmp.eq.s32.totalorder %s9, 0
      %p107 = por %p105, %p106
      %p108 = scmp.ne.s32.totalorder %s97, %s100
      %p109 = scmp.eq.s32.totalorder %s14, 1
      %p110 = por %p108, %p109
      %p111 = scmp.ne.s32.totalorder %s100, %s101
      %p112 = scmp.eq.s32.totalorder %s14, 0
      %p113 = por %p111, %p112
      %p114 = scmp.ne.s32.totalorder %s100, %s101
      %p115 = scmp.eq.s32.totalorder %s15, 1
      %p116 = por %p114, %p115
      %p118 = scmp.ne.s32.totalorder %s101, %s117
      %p119 = scmp.eq.s32.totalorder %s15, 0
      %p120 = por %p118, %p119
      %p121 = scmp.le.s32.totalorder 1, %s9
      %p122 = scmp.lt.s32.totalorder %s9, 3
      %p123 = pnand %p121, %p122
      %p124 = pneg %p123
      // Predicated region
      $region9: #{tpu_custom_call.1} parent=5 // pred_check
        _
      $region10: #{tpu_custom_call.1} parent=5 // pred_check_branch
        %126 = sbr.rel (%p123) target = $region12
      $region11: #{tpu_custom_call.1} parent=5 // pred_region
        %s127 = ssub.s32 %s9, 1
      $region12: #{tpu_custom_call.1} parent=5 // pred_fallthru
        _
      %p128 = scmp.lt.s32.totalorder %s9, 2
      // Predicated region
      $region13: #{tpu_custom_call.1} parent=5 // pred_check
        %p129 = pneg %p128
      $region14: #{tpu_custom_call.1} parent=5 // pred_check_branch
        %131 = sbr.rel (%p129) target = $region16
      $region15: #{tpu_custom_call.1} parent=5 // pred_region
        // Predicated region
        $region17: #{tpu_custom_call.1} parent=15 // pred_check
          %p132 = pneg %p29
        $region18: #{tpu_custom_call.1} parent=15 // pred_check_branch
          %134 = sbr.rel (%p132) target = $region20
        $region19: #{tpu_custom_call.1} parent=15 // pred_region
          %s135 = sand.u32 %s19, 1
          %s136 = sand.u32 %s19, 1
          %s137 = smul.addr %s136, 64
          %s138 = scalar_lea.vmem [#allocation2], %s137
          %s139 = smul.u32 4, %s9
          %s140 = smul.addr %s139, 8
          %s141 = scalar_lea.vmem %s0, %s140
          // Predicated region
          $region21: #{tpu_custom_call.1} parent=19 // pred_check
            _
          $region22: #{tpu_custom_call.1} parent=19 // pred_check_branch
            %143 = sbr.rel (0) target = $region24
          $region23: #{tpu_custom_call.1} parent=19 // pred_region
            // Predicated region
            $region25: #{tpu_custom_call.1} parent=23 // pred_check
              _
            $region26: #{tpu_custom_call.1} parent=23 // pred_check_branch
              %145 = sbr.rel (0) target = $region28
            $region27: #{tpu_custom_call.1} parent=23 // pred_region
              // Predicated region
              $region40: #{tpu_custom_call.1} parent=27 // pred_check
                _
              $region41: #{tpu_custom_call.1} parent=27 // pred_check_branch
                %174 = sbr.rel (0) target = $region43
              $region42: #{tpu_custom_call.1} parent=27 // pred_region
                loop: start=0, step=1, limit=1
                $region44: #{tpu_custom_call.1} parent=42 // loop_pre_header
                  _
                $region45: #{tpu_custom_call.1} parent=42 // loop_header
                  %s176 = sphi 0, %s180
                  %p177 = scmp.ge.s32.totalorder %s176, 1
                  %s181 = sphi %s141, %s141
                  %s182 = sphi %s138, %s138
                $region46: #{tpu_custom_call.1} parent=42 // loop_header_branch
                  %179 = sbr.rel (%p177) target = $region50
                $region47: #{tpu_custom_call.1} parent=42 // loop_body
                  %v183 = vld [vmem:[%s181] sm:$0xff]
                  %184 = vst [vmem:[%s182] sm:$0xff] %v183
                  %v185 = vld [vmem:[%s181 + $0x8] sm:$0xff]
                  %186 = vst [vmem:[%s182 + $0x8] sm:$0xff] %v185
                  %v187 = vld [vmem:[%s181 + $0x10] sm:$0xff]
                  %188 = vst [vmem:[%s182 + $0x10] sm:$0xff] %v187
                  %v189 = vld [vmem:[%s181 + $0x18] sm:$0xff]
                  %190 = vst [vmem:[%s182 + $0x18] sm:$0xff] %v189
                  %v191 = vld [vmem:[%s181 + $0x40] sm:$0xff]
                  %192 = vst [vmem:[%s182 + $0x20] sm:$0xff] %v191
                  %v193 = vld [vmem:[%s181 + $0x48] sm:$0xff]
                  %194 = vst [vmem:[%s182 + $0x28] sm:$0xff] %v193
                  %v195 = vld [vmem:[%s181 + $0x50] sm:$0xff]
                  %196 = vst [vmem:[%s182 + $0x30] sm:$0xff] %v195
                  %v197 = vld [vmem:[%s181 + $0x58] sm:$0xff]
                  %198 = vst [vmem:[%s182 + $0x38] sm:$0xff] %v197
                $region48: #{tpu_custom_call.1} parent=42 // loop_footer
                  %s180 = sadd.s32 1, %s176
                $region49: #{tpu_custom_call.1} parent=42 // loop_footer_branch
                  %175 = sbr.rel target = $region45
                $region50: #{tpu_custom_call.1} parent=42 // loop_exit
                  _
              $region43: #{tpu_custom_call.1} parent=27 // pred_fallthru
                _
              // Predicated region
              $region51: #{tpu_custom_call.1} parent=27 // pred_check
                _
              $region52: #{tpu_custom_call.1} parent=27 // pred_check_branch
                %200 = sbr.rel target = $region54
              $region53: #{tpu_custom_call.1} parent=27 // pred_region
                _
              $region54: #{tpu_custom_call.1} parent=27 // pred_fallthru
                _
            $region28: #{tpu_custom_call.1} parent=23 // pred_fallthru
              _
            // Predicated region
            $region29: #{tpu_custom_call.1} parent=23 // pred_check
              _
            $region30: #{tpu_custom_call.1} parent=23 // pred_check_branch
              %147 = sbr.rel target = $region32
            $region31: #{tpu_custom_call.1} parent=23 // pred_region
              loop: start=0, step=1, limit=1
              $region33: #{tpu_custom_call.1} parent=31 // loop_pre_header
                _
              $region34: #{tpu_custom_call.1} parent=31 // loop_header
                %s150 = sphi 0, %s154
                %p151 = scmp.ge.s32.totalorder %s150, 1
                %s155 = sphi %s141, %s141
                %s156 = sphi %s138, %s138
              $region35: #{tpu_custom_call.1} parent=31 // loop_header_branch
                %153 = sbr.rel (%p151) target = $region39
              $region36: #{tpu_custom_call.1} parent=31 // loop_body
                %v157 = vld [vmem:[%s155] sm:$0xff]
                %158 = vst [vmem:[%s156] sm:$0xff] %v157
                %v159 = vld [vmem:[%s155 + $0x8] sm:$0xff]
                %160 = vst [vmem:[%s156 + $0x8] sm:$0xff] %v159
                %v161 = vld [vmem:[%s155 + $0x10] sm:$0xff]
                %162 = vst [vmem:[%s156 + $0x10] sm:$0xff] %v161
                %v163 = vld [vmem:[%s155 + $0x18] sm:$0xff]
                %164 = vst [vmem:[%s156 + $0x18] sm:$0xff] %v163
                %v165 = vld [vmem:[%s155 + $0x40] sm:$0xff]
                %166 = vst [vmem:[%s156 + $0x20] sm:$0xff] %v165
                %v167 = vld [vmem:[%s155 + $0x48] sm:$0xff]
                %168 = vst [vmem:[%s156 + $0x28] sm:$0xff] %v167
                %v169 = vld [vmem:[%s155 + $0x50] sm:$0xff]
                %170 = vst [vmem:[%s156 + $0x30] sm:$0xff] %v169
                %v171 = vld [vmem:[%s155 + $0x58] sm:$0xff]
                %172 = vst [vmem:[%s156 + $0x38] sm:$0xff] %v171
              $region37: #{tpu_custom_call.1} parent=31 // loop_footer
                %s154 = sadd.s32 1, %s150
              $region38: #{tpu_custom_call.1} parent=31 // loop_footer_branch
                %149 = sbr.rel target = $region34
              $region39: #{tpu_custom_call.1} parent=31 // loop_exit
                _
            $region32: #{tpu_custom_call.1} parent=23 // pred_fallthru
              _
          $region24: #{tpu_custom_call.1} parent=19 // pred_fallthru
            _
          %201 = vnop
        $region20: #{tpu_custom_call.1} parent=15 // pred_fallthru
          _
        // Predicated region
        $region55: #{tpu_custom_call.1} parent=15 // pred_check
          %p202 = pneg %p55
        $region56: #{tpu_custom_call.1} parent=15 // pred_check_branch
          %204 = sbr.rel (%p202) target = $region58
        $region57: #{tpu_custom_call.1} parent=15 // pred_region
          %s205 = smul.u32 4, %s9
          %p206 = scmp.lt.s32.totalorder %s205, 7
          %s207 = scalar_select %p206, %s205, 7
          %s208 = smul.addr %s207, 8
          %s209 = scalar_lea.vmem %s1, %s208
          %s210 = smul.u32 4, %s9
        $region58: #{tpu_custom_call.1} parent=15 // pred_fallthru
          _
        // Predicated region
        $region59: #{tpu_custom_call.1} parent=15 // pred_check
          %p211 = pneg %p81
        $region60: #{tpu_custom_call.1} parent=15 // pred_check_branch
          %213 = sbr.rel (%p211) target = $region62
        $region61: #{tpu_custom_call.1} parent=15 // pred_region
          %s214 = smul.u32 4, %s9
          %p215 = scmp.lt.s32.totalorder %s214, 7
          %s216 = scalar_select %p215, %s214, 7
          %s217 = smul.addr %s216, 8
          %s218 = scalar_lea.vmem %s2, %s217
          %s219 = smul.u32 4, %s9
        $region62: #{tpu_custom_call.1} parent=15 // pred_fallthru
          _
      $region16: #{tpu_custom_call.1} parent=5 // pred_fallthru
        _
      %p220 = scmp.le.s32.totalorder 1, %s9
      %p221 = scmp.lt.s32.totalorder %s9, 3
      %p222 = pnand %p220, %p221
      %p223 = pneg %p222
      // Predicated region
      $region63: #{tpu_custom_call.1} parent=5 // pred_check
        _
      $region64: #{tpu_custom_call.1} parent=5 // pred_check_branch
        %225 = sbr.rel (%p222) target = $region66
      $region65: #{tpu_custom_call.1} parent=5 // pred_region
        %s226 = ssub.s32 %s9, 1
        %s227 = sand.u32 %s22, 1
        %s228 = sand.u32 %s22, 1
        %s229 = smul.addr %s228, 64
        %s230 = scalar_lea.vmem [#allocation2], %s229
        // Predicated region
        $region67: #{tpu_custom_call.1} parent=65 // pred_check
          %p231 = pneg %p35
        $region68: #{tpu_custom_call.1} parent=65 // pred_check_branch
          %233 = sbr.rel (%p231) target = $region70
        $region69: #{tpu_custom_call.1} parent=65 // pred_region
          _
        $region70: #{tpu_custom_call.1} parent=65 // pred_fallthru
          _
        %s234 = sand.u32 %s22, 1
        %s235 = sand.u32 %s22, 1
        %s236 = smul.addr %s235, 64
        %s237 = scalar_lea.vmem [#allocation2], %s236
        %p238 = pneg %p35
        %p239 = pneg %p32
        %s240 = smul.u32 4, %s14
        %p241 = scmp.lt.s32.totalorder %s240, 7
        %s242 = scalar_select %p241, %s240, 7
        %s243 = smul.addr %s242, 8
        %s244 = scalar_lea.vmem %s1, %s243
        %p245 = pneg %p61
        %p246 = pneg %p58
        %s247 = smul.u32 4, %s14
        %p248 = scmp.lt.s32.totalorder %s247, 7
        %s249 = scalar_select %p248, %s247, 7
        %s250 = smul.addr %s249, 8
        %s251 = scalar_lea.vmem %s2, %s250
        %p252 = pneg %p87
        %p253 = pneg %p84
        %p254 = pneg %p113
        %p255 = pneg %p110
        %s256 = sand.u32 %s100, 1
        %s257 = sand.u32 %s100, 1
        %s258 = smul.addr %s257, 64
        %s259 = scalar_lea.vmem [#allocation3], %s258
        %s260 = smul.u32 4, %s14
        %s261 = smul.u32 4, %s14
        %p262 = scmp.lt.s32.totalorder %s261, 7
        %s263 = scalar_select %p262, %s261, 7
        %s264 = smul.addr %s263, 8
        %s265 = scalar_lea.vmem %s1, %s264
        %s266 = smul.u32 4, %s14
        %s267 = smul.u32 4, %s14
        %p268 = scmp.lt.s32.totalorder %s267, 7
        %s269 = scalar_select %p268, %s267, 7
        %s270 = smul.addr %s269, 8
        %s271 = scalar_lea.vmem %s2, %s270
        %s272 = smul.u32 4, %s14
        %s273 = smul.u32 4, %s14
        %v274 = vld [vmem:[%s230] sm:$0xff]
        %v275 = vld [vmem:[%s230 + $0x8] sm:$0xff]
        %v276 = vld [vmem:[%s230 + $0x10] sm:$0xff]
        %v277 = vld [vmem:[%s230 + $0x18] sm:$0xff]
        %v278 = vld [vmem:[%s230 + $0x20] sm:$0xff]
        %v279 = vld [vmem:[%s230 + $0x28] sm:$0xff]
        %v280 = vld [vmem:[%s230 + $0x30] sm:$0xff]
        %v281 = vld [vmem:[%s230 + $0x38] sm:$0xff]
        %vm282 = vcmask 261120
        %v283 = vsel %vm282, %v274, 0.0
        %284 = vadd.xlane.f32.xlu0 %v283
        %v285 = vpop.xlane.xlu0 %284
        %v286 = vsel %vm282, %v275, 0.0
        %287 = vadd.xlane.f32.xlu0 %v286
        %v288 = vpop.xlane.xlu0 %287
        %v289 = vsel %vm282, %v276, 0.0
        %290 = vadd.xlane.f32.xlu0 %v289
        %v291 = vpop.xlane.xlu0 %290
        %v292 = vsel %vm282, %v277, 0.0
        %293 = vadd.xlane.f32.xlu0 %v292
        %v294 = vpop.xlane.xlu0 %293
        %v295 = vsel %vm282, %v278, 0.0
        %296 = vadd.xlane.f32.xlu0 %v295
        %v297 = vpop.xlane.xlu0 %296
        %v298 = vsel %vm282, %v279, 0.0
        %299 = vadd.xlane.f32.xlu0 %v298
        %v300 = vpop.xlane.xlu0 %299
        %v301 = vsel %vm282, %v280, 0.0
        %302 = vadd.xlane.f32.xlu0 %v301
        %v303 = vpop.xlane.xlu0 %302
        %v304 = vsel %vm282, %v281, 0.0
        %305 = vadd.xlane.f32.xlu0 %v304
        %v306 = vpop.xlane.xlu0 %305
        %v307 = vadd.f32 %v285, %v297
        %v308 = vadd.f32 %v288, %v300
        %v309 = vadd.f32 %v291, %v303
        %v310 = vadd.f32 %v294, %v306
        %v311 = vrcp.pop 64.0
        %v312 = vmul.f32 %v307, %v311
        %v313 = vmul.f32 %v308, %v311
        %v314 = vmul.f32 %v309, %v311
        %v315 = vmul.f32 %v310, %v311
        %v316 = vsub.f32 %v274, %v312
        %v317 = vsub.f32 %v275, %v313
        %v318 = vsub.f32 %v276, %v314
        %v319 = vsub.f32 %v277, %v315
        %v320 = vsub.f32 %v278, %v312
        %v321 = vsub.f32 %v279, %v313
        %v322 = vsub.f32 %v280, %v314
        %v323 = vsub.f32 %v281, %v315
        %v324 = vmul.f32 %v316, %v316
        %v325 = vmul.f32 %v317, %v317
        %v326 = vmul.f32 %v318, %v318
        %v327 = vmul.f32 %v319, %v319
        %v328 = vmul.f32 %v320, %v320
        %v329 = vmul.f32 %v321, %v321
        %v330 = vmul.f32 %v322, %v322
        %v331 = vmul.f32 %v323, %v323
        %v332 = vsel %vm282, %v324, 0.0
        %333 = vadd.xlane.f32.xlu0 %v332
        %v334 = vpop.xlane.xlu0 %333
        %v335 = vsel %vm282, %v325, 0.0
        %336 = vadd.xlane.f32.xlu0 %v335
        %v337 = vpop.xlane.xlu0 %336
        %v338 = vsel %vm282, %v326, 0.0
        %339 = vadd.xlane.f32.xlu0 %v338
        %v340 = vpop.xlane.xlu0 %339
        %v341 = vsel %vm282, %v327, 0.0
        %342 = vadd.xlane.f32.xlu0 %v341
        %v343 = vpop.xlane.xlu0 %342
        %v344 = vsel %vm282, %v328, 0.0
        %345 = vadd.xlane.f32.xlu0 %v344
        %v346 = vpop.xlane.xlu0 %345
        %v347 = vsel %vm282, %v329, 0.0
        %348 = vadd.xlane.f32.xlu0 %v347
        %v349 = vpop.xlane.xlu0 %348
        %v350 = vsel %vm282, %v330, 0.0
        %351 = vadd.xlane.f32.xlu0 %v350
        %v352 = vpop.xlane.xlu0 %351
        %v353 = vsel %vm282, %v331, 0.0
        %354 = vadd.xlane.f32.xlu0 %v353
        %v355 = vpop.xlane.xlu0 %354
        %v356 = vadd.f32 %v334, %v346
        %v357 = vadd.f32 %v337, %v349
        %v358 = vadd.f32 %v340, %v352
        %v359 = vadd.f32 %v343, %v355
        %v360 = vmul.f32 %v356, %v311
        %v361 = vmul.f32 %v357, %v311
        %v362 = vmul.f32 %v358, %v311
        %v363 = vmul.f32 %v359, %v311
        %v364 = vadd.f32 %v360, 1e-05
        %v365 = vadd.f32 %v361, 1e-05
        %v366 = vadd.f32 %v362, 1e-05
        %v367 = vadd.f32 %v363, 1e-05
        %v368 = vrsqrt.pop %v364
        %v369 = vrsqrt.pop %v365
        %v370 = vrsqrt.pop %v366
        %v371 = vrsqrt.pop %v367
        %v372 = vld [vmem:[%s265] sm:$0xff]
        %v373 = vld [vmem:[%s265 + $0x8] sm:$0xff]
        %v374 = vld [vmem:[%s265 + $0x10] sm:$0xff]
        %v375 = vld [vmem:[%s265 + $0x18] sm:$0xff]
        %v376 = vmul.f32 %v368, %v372
        %v377 = vmul.f32 %v369, %v373
        %v378 = vmul.f32 %v370, %v374
        %v379 = vmul.f32 %v371, %v375
        %v380 = vld [vmem:[%s271] sm:$0xff]
        %v381 = vld [vmem:[%s271 + $0x8] sm:$0xff]
        %v382 = vld [vmem:[%s271 + $0x10] sm:$0xff]
        %v383 = vld [vmem:[%s271 + $0x18] sm:$0xff]
        %v384 = vmul.f32 %v312, %v376
        %v385 = vmul.f32 %v313, %v377
        %v386 = vmul.f32 %v314, %v378
        %v387 = vmul.f32 %v315, %v379
        %v388 = vsub.f32 %v380, %v384
        %v389 = vsub.f32 %v381, %v385
        %v390 = vsub.f32 %v382, %v386
        %v391 = vsub.f32 %v383, %v387
        %393 = vset.pattern.permute.xlu0 0
        %394 = vperm.xlu0 %393, %v376
        %v395 = vpop.permute.xlu0 %394
        %398 = vset.pattern.permute.xlu0 0
        %399 = vperm.xlu0 %398, %v377
        %v400 = vpop.permute.xlu0 %399
        %403 = vset.pattern.permute.xlu0 0
        %404 = vperm.xlu0 %403, %v378
        %v405 = vpop.permute.xlu0 %404
        %408 = vset.pattern.permute.xlu0 0
        %409 = vperm.xlu0 %408, %v379
        %v410 = vpop.permute.xlu0 %409
        %v412 = vmul.f32 %v274, %v395
        %v413 = vmul.f32 %v275, %v400
        %v414 = vmul.f32 %v276, %v405
        %v415 = vmul.f32 %v277, %v410
        %v416 = vmul.f32 %v278, %v395
        %v417 = vmul.f32 %v279, %v400
        %v418 = vmul.f32 %v280, %v405
        %v419 = vmul.f32 %v281, %v410
        %421 = vset.pattern.permute.xlu0 0
        %422 = vperm.xlu0 %421, %v388
        %v423 = vpop.permute.xlu0 %422
        %426 = vset.pattern.permute.xlu0 0
        %427 = vperm.xlu0 %426, %v389
        %v428 = vpop.permute.xlu0 %427
        %431 = vset.pattern.permute.xlu0 0
        %432 = vperm.xlu0 %431, %v390
        %v433 = vpop.permute.xlu0 %432
        %436 = vset.pattern.permute.xlu0 0
        %437 = vperm.xlu0 %436, %v391
        %v438 = vpop.permute.xlu0 %437
        %v440 = vadd.f32 %v412, %v423
        %v441 = vadd.f32 %v413, %v428
        %v442 = vadd.f32 %v414, %v433
        %v443 = vadd.f32 %v415, %v438
        %v444 = vadd.f32 %v416, %v423
        %v445 = vadd.f32 %v417, %v428
        %v446 = vadd.f32 %v418, %v433
        %v447 = vadd.f32 %v419, %v438
        %448 = vst.msk [vmem:[%s259] sm:$0xff] %vm282, %v440
        %449 = vst.msk [vmem:[%s259 + $0x8] sm:$0xff] %vm282, %v441
        %450 = vst.msk [vmem:[%s259 + $0x10] sm:$0xff] %vm282, %v442
        %451 = vst.msk [vmem:[%s259 + $0x18] sm:$0xff] %vm282, %v443
        %452 = vst.msk [vmem:[%s259 + $0x20] sm:$0xff] %vm282, %v444
        %453 = vst.msk [vmem:[%s259 + $0x28] sm:$0xff] %vm282, %v445
        %454 = vst.msk [vmem:[%s259 + $0x30] sm:$0xff] %vm282, %v446
        %455 = vst.msk [vmem:[%s259 + $0x38] sm:$0xff] %vm282, %v447
        %s456 = sand.u32 %s100, 1
        %s457 = sand.u32 %s100, 1
        %s458 = smul.addr %s457, 64
        %s459 = scalar_lea.vmem [#allocation3], %s458
        // Predicated region
        $region71: #{tpu_custom_call.1} parent=65 // pred_check
          %p460 = pneg %p110
        $region72: #{tpu_custom_call.1} parent=65 // pred_check_branch
          %462 = sbr.rel (%p460) target = $region74
        $region73: #{tpu_custom_call.1} parent=65 // pred_region
          %s463 = smul.u32 4, %s14
          %s464 = smul.addr %s463, 8
          %s465 = scalar_lea.vmem %s3, %s464
          // Predicated region
          $region75: #{tpu_custom_call.1} parent=73 // pred_check
            _
          $region76: #{tpu_custom_call.1} parent=73 // pred_check_branch
            %467 = sbr.rel (0) target = $region78
          $region77: #{tpu_custom_call.1} parent=73 // pred_region
            // Predicated region
            $region79: #{tpu_custom_call.1} parent=77 // pred_check
              _
            $region80: #{tpu_custom_call.1} parent=77 // pred_check_branch
              %469 = sbr.rel (0) target = $region82
            $region81: #{tpu_custom_call.1} parent=77 // pred_region
              // Predicated region
              $region94: #{tpu_custom_call.1} parent=81 // pred_check
                _
              $region95: #{tpu_custom_call.1} parent=81 // pred_check_branch
                %498 = sbr.rel (0) target = $region97
              $region96: #{tpu_custom_call.1} parent=81 // pred_region
                loop: start=0, step=1, limit=1
                $region98: #{tpu_custom_call.1} parent=96 // loop_pre_header
                  _
                $region99: #{tpu_custom_call.1} parent=96 // loop_header
                  %s500 = sphi 0, %s504
                  %p501 = scmp.ge.s32.totalorder %s500, 1
                  %s505 = sphi %s459, %s459
                  %s506 = sphi %s465, %s465
                $region100: #{tpu_custom_call.1} parent=96 // loop_header_branch
                  %503 = sbr.rel (%p501) target = $region104
                $region101: #{tpu_custom_call.1} parent=96 // loop_body
                  %v507 = vld [vmem:[%s505] sm:$0xff]
                  %508 = vst [vmem:[%s506] sm:$0xff] %v507
                  %v509 = vld [vmem:[%s505 + $0x8] sm:$0xff]
                  %510 = vst [vmem:[%s506 + $0x8] sm:$0xff] %v509
                  %v511 = vld [vmem:[%s505 + $0x10] sm:$0xff]
                  %512 = vst [vmem:[%s506 + $0x10] sm:$0xff] %v511
                  %v513 = vld [vmem:[%s505 + $0x18] sm:$0xff]
                  %514 = vst [vmem:[%s506 + $0x18] sm:$0xff] %v513
                  %v515 = vld [vmem:[%s505 + $0x20] sm:$0xff]
                  %516 = vst [vmem:[%s506 + $0x40] sm:$0xff] %v515
                  %v517 = vld [vmem:[%s505 + $0x28] sm:$0xff]
                  %518 = vst [vmem:[%s506 + $0x48] sm:$0xff] %v517
                  %v519 = vld [vmem:[%s505 + $0x30] sm:$0xff]
                  %520 = vst [vmem:[%s506 + $0x50] sm:$0xff] %v519
                  %v521 = vld [vmem:[%s505 + $0x38] sm:$0xff]
                  %522 = vst [vmem:[%s506 + $0x58] sm:$0xff] %v521
                $region102: #{tpu_custom_call.1} parent=96 // loop_footer
                  %s504 = sadd.s32 1, %s500
                $region103: #{tpu_custom_call.1} parent=96 // loop_footer_branch
                  %499 = sbr.rel target = $region99
                $region104: #{tpu_custom_call.1} parent=96 // loop_exit
                  _
              $region97: #{tpu_custom_call.1} parent=81 // pred_fallthru
                _
              // Predicated region
              $region105: #{tpu_custom_call.1} parent=81 // pred_check
                _
              $region106: #{tpu_custom_call.1} parent=81 // pred_check_branch
                %524 = sbr.rel target = $region108
              $region107: #{tpu_custom_call.1} parent=81 // pred_region
                _
              $region108: #{tpu_custom_call.1} parent=81 // pred_fallthru
                _
            $region82: #{tpu_custom_call.1} parent=77 // pred_fallthru
              _
            // Predicated region
            $region83: #{tpu_custom_call.1} parent=77 // pred_check
              _
            $region84: #{tpu_custom_call.1} parent=77 // pred_check_branch
              %471 = sbr.rel target = $region86
            $region85: #{tpu_custom_call.1} parent=77 // pred_region
              loop: start=0, step=1, limit=1
              $region87: #{tpu_custom_call.1} parent=85 // loop_pre_header
                _
              $region88: #{tpu_custom_call.1} parent=85 // loop_header
                %s474 = sphi 0, %s478
                %p475 = scmp.ge.s32.totalorder %s474, 1
                %s479 = sphi %s459, %s459
                %s480 = sphi %s465, %s465
              $region89: #{tpu_custom_call.1} parent=85 // loop_header_branch
                %477 = sbr.rel (%p475) target = $region93
              $region90: #{tpu_custom_call.1} parent=85 // loop_body
                %v481 = vld [vmem:[%s479] sm:$0xff]
                %482 = vst [vmem:[%s480] sm:$0xff] %v481
                %v483 = vld [vmem:[%s479 + $0x8] sm:$0xff]
                %484 = vst [vmem:[%s480 + $0x8] sm:$0xff] %v483
                %v485 = vld [vmem:[%s479 + $0x10] sm:$0xff]
                %486 = vst [vmem:[%s480 + $0x10] sm:$0xff] %v485
                %v487 = vld [vmem:[%s479 + $0x18] sm:$0xff]
                %488 = vst [vmem:[%s480 + $0x18] sm:$0xff] %v487
                %v489 = vld [vmem:[%s479 + $0x20] sm:$0xff]
                %490 = vst [vmem:[%s480 + $0x40] sm:$0xff] %v489
                %v491 = vld [vmem:[%s479 + $0x28] sm:$0xff]
                %492 = vst [vmem:[%s480 + $0x48] sm:$0xff] %v491
                %v493 = vld [vmem:[%s479 + $0x30] sm:$0xff]
                %494 = vst [vmem:[%s480 + $0x50] sm:$0xff] %v493
                %v495 = vld [vmem:[%s479 + $0x38] sm:$0xff]
                %496 = vst [vmem:[%s480 + $0x58] sm:$0xff] %v495
              $region91: #{tpu_custom_call.1} parent=85 // loop_footer
                %s478 = sadd.s32 1, %s474
              $region92: #{tpu_custom_call.1} parent=85 // loop_footer_branch
                %473 = sbr.rel target = $region88
              $region93: #{tpu_custom_call.1} parent=85 // loop_exit
                _
            $region86: #{tpu_custom_call.1} parent=77 // pred_fallthru
              _
          $region78: #{tpu_custom_call.1} parent=73 // pred_fallthru
            _
          %525 = vnop
        $region74: #{tpu_custom_call.1} parent=65 // pred_fallthru
          _
      $region66: #{tpu_custom_call.1} parent=5 // pred_fallthru
        _
      %p526 = scmp.le.s32.totalorder 2, %s9
      // Predicated region
      $region109: #{tpu_custom_call.1} parent=5 // pred_check
        %p527 = pneg %p526
      $region110: #{tpu_custom_call.1} parent=5 // pred_check_branch
        %529 = sbr.rel (%p527) target = $region112
      $region111: #{tpu_custom_call.1} parent=5 // pred_region
        %s530 = ssub.s32 %s9, 2
        // Predicated region
        $region113: #{tpu_custom_call.1} parent=111 // pred_check
          %p531 = pneg %p116
        $region114: #{tpu_custom_call.1} parent=111 // pred_check_branch
          %533 = sbr.rel (%p531) target = $region116
        $region115: #{tpu_custom_call.1} parent=111 // pred_region
          %s534 = sand.u32 %s101, 1
          %s535 = sand.u32 %s101, 1
          %s536 = smul.addr %s535, 64
          %s537 = scalar_lea.vmem [#allocation3], %s536
        $region116: #{tpu_custom_call.1} parent=111 // pred_fallthru
          _
      $region112: #{tpu_custom_call.1} parent=5 // pred_fallthru
        _
    $region6: #{tpu_custom_call.1} parent=1 // loop_footer
      %s13 = sadd.s32 1, %s9
    $region7: #{tpu_custom_call.1} parent=1 // loop_footer_branch
      %8 = sbr.rel target = $region3
    $region8: #{tpu_custom_call.1} parent=1 // loop_exit
      _

</llo_original>
